<compile_context>
chip_gen: v5e
topology: v5e:2x2
jax: 0.10.0
libtpu: 0.0.40
codegen_flags: <defaults>
</compile_context>

<pallas_src>
import jax
import jax.numpy as jnp
from jax.experimental import pallas as pl
from jax.experimental.pallas import tpu as pltpu


# --------------------------------------------------------------------------- #
# Kernel
# --------------------------------------------------------------------------- #
def no_att_kernel(x_ref, w_ref, s_ref, o_ref):
    """All H per-head Linears (and G lane-packed batch rows) as one matmul.

    x_ref: (TB, Cg) VMEM  -- Cg = G*C lane-packed input tile (N == 1 flattened)
    w_ref: (Cg, Cg) VMEM  -- block-diagonal weight (G copies of per-head W_h^T)
    s_ref: (1,  Cg) VMEM  -- per-head q_scale expanded to a lane vector
    o_ref: (TB, Cg) VMEM  -- output tile
    """
    y = jnp.dot(x_ref[...], w_ref[...], preferred_element_type=jnp.float32)
    # Scale after f32 accumulation (matches PyTorch: (x @ W^T) * s), then one
    # full-width (multiple-of-128 lanes) store.
    o_ref[...] = (y * s_ref[...]).astype(o_ref.dtype)


# --------------------------------------------------------------------------- #
# One-time parameter packing (hoisted out of the per-call path)
# --------------------------------------------------------------------------- #
def no_att_lane_group(C):
    """Batch rows folded into the 128-lane axis: G = 128 // C when C | 128."""
    return 128 // C if (C < 128 and 128 % C == 0) else 1


def no_att_pack_params(w_stacked, q_scale, *, group, dtype):
    """Build the (G*C, G*C) block-diagonal weight and (1, G*C) scale vector.

    Each Ch x Ch diagonal block is W_h^T so that y = x @ W computes every
    head's Linear(Ch, Ch, bias=False); the whole (C, C) block-diagonal is then
    repeated G times on the diagonal for the lane-packed batch groups.
    NOTE: for large H*C this dense block-diagonal wastes H-fold weight bytes /
    MXU FLOPs; a head-group grid axis would be the next step there.
    """
    H, Ch, Ch2 = w_stacked.shape
    assert Ch == Ch2
    C = H * Ch
    w_bd = jax.scipy.linalg.block_diag(*[w_stacked[h].T for h in range(H)])
    w_packed = jax.scipy.linalg.block_diag(*([w_bd] * group)).astype(dtype)
    scale_vec = jnp.repeat(q_scale.astype(jnp.float32), Ch).reshape(1, C)
    scale_packed = jnp.tile(scale_vec, (1, group))
    return w_packed, scale_packed


# --------------------------------------------------------------------------- #
# VMEM-aware tiling helpers
# --------------------------------------------------------------------------- #
def _vmem_budget_bytes():
    """~60% of this chip's physical VMEM (v5e/v6e 128 MiB, v7x 64 MiB)."""
    cap = None
    try:
        cap = getattr(pltpu.get_tpu_info(), "vmem_capacity_bytes", None)
    except Exception:
        cap = None
    if not cap:
        cap = 64 << 20  # conservative fallback: v7x physical VMEM
    return int(0.6 * cap)


def _pick_tile_rows(bg, cg, itemsize, vmem_limit):
    """Largest batch tile whose double-buffered in/out tiles fit the budget."""
    per_row = 4 * cg * itemsize                # 2 bufs x (x tile + out tile)
    resident = 2 * (cg * cg + cg) * itemsize   # weight + scale (worst case 2 bufs)
    avail = int(0.8 * vmem_limit) - resident
    tb_vmem = max(8, (max(avail, per_row) // per_row) // 8 * 8)
    if bg <= 16:
        return int(bg)                         # single tiny block (full-dim spec)
    # >= 2 grid steps so the second TensorCore on v7x gets a share of the batch.
    tb_half = -(-bg // 2)
    tb_half = -(-tb_half // 8) * 8
    return int(max(8, min(tb_vmem, tb_half, 2048)))


# --------------------------------------------------------------------------- #
# pallas_call wrapper
# --------------------------------------------------------------------------- #
def _pallas_no_att(xg, w_packed, scale_packed, tb, grid, vmem_limit,
                   *, single_buffer_consts):
    bg, cg = xg.shape
    const_kwargs = (
        {"pipeline_mode": pl.Buffered(1)} if single_buffer_consts else {}
    )
    return pl.pallas_call(
        no_att_kernel,
        out_shape=jax.ShapeDtypeStruct((bg, cg), xg.dtype),
        grid=grid,
        in_specs=[
            pl.BlockSpec((tb, cg), lambda i: (i, 0)),                  # x tile
            pl.BlockSpec((cg, cg), lambda i: (0, 0), **const_kwargs),  # weight
            pl.BlockSpec((1, cg), lambda i: (0, 0), **const_kwargs),   # scale
        ],
        out_specs=pl.BlockSpec((tb, cg), lambda i: (i, 0)),
        compiler_params=pltpu.CompilerParams(
            dimension_semantics=("parallel",),   # shard batch across TCs on v7x
            vmem_limit_bytes=int(vmem_limit),
        ),
    )(xg, w_packed, scale_packed)


def no_att_forward(x, w_packed, scale_packed, *, group):
    """x: (B, N, C) with N == 1; w_packed: (G*C, G*C); scale_packed: (1, G*C)."""
    B, N, C = x.shape
    assert N == 1, "No_Att forward requires N == 1 (reshape(B,1,Ch) constraint)"
    G = group
    Cg = G * C
    assert w_packed.shape == (Cg, Cg) and scale_packed.shape == (1, Cg)

    # ---- lane packing: fold G batch rows into the 128-lane axis ----
    x2 = x.reshape(B, C)
    Bp = pl.cdiv(B, G) * G
    if Bp != B:
        # Only a < G-row pad so the lane-pack reshape is exact; the old
        # pad-to-tile_b copy of the whole input is gone.
        x2 = jnp.pad(x2, ((0, Bp - B), (0, 0)))
    Bg = Bp // G
    xg = x2.reshape(Bg, Cg)

    # ---- VMEM-aware batch tiling (no padding; Pallas masks the last block) ----
    itemsize = jnp.dtype(x.dtype).itemsize
    vmem_limit = _vmem_budget_bytes()
    tb = _pick_tile_rows(Bg, Cg, itemsize, vmem_limit)
    grid = (pl.cdiv(Bg, tb),)

    try:
        out = _pallas_no_att(xg, w_packed, scale_packed, tb, grid, vmem_limit,
                             single_buffer_consts=True)
    except Exception:
        # pipeline_mode=pl.Buffered(1) not supported on this build; fall back
        # to default double-buffering for the grid-invariant weight/scale.
        out = _pallas_no_att(xg, w_packed, scale_packed, tb, grid, vmem_limit,
                             single_buffer_consts=False)

    return out.reshape(Bp, C)[:B].reshape(B, 1, C)


# --------------------------------------------------------------------------- #
# Pure-JAX reference mirroring the PyTorch forward
# --------------------------------------------------------------------------- #
def no_att_reference(x, w_stacked, q_scale):
    B, N, C = x.shape
    H, Ch, _ = w_stacked.shape
    outs = []
    for h in range(H):
        xh = x[..., h * Ch:(h + 1) * Ch]                     # (B, N, Ch)
        yh = jnp.einsum('bnc,oc->bno', xh, w_stacked[h])     # Linear (no bias)
        yh = yh * q_scale[h]
        outs.append(yh.reshape(B, 1, Ch))
    return jnp.concatenate(outs, axis=2)


if __name__ == "__main__":
    # Module config: dim=32, num_heads=2 -> head_dim Ch=16; N must be 1.
    B, N, C, H = 2, 1, 32, 2
    Ch = C // H

    key = jax.random.PRNGKey(0)
    kx, kw, ks = jax.random.split(key, 3)

    x = jax.random.normal(kx, (B, N, C), dtype=jnp.float32)
    # Stacked weights of the H per-head Linear(Ch, Ch, bias=False)
    w_stacked = 0.05 * jax.random.normal(kw, (H, Ch, Ch), dtype=jnp.float32)
    # q_scale initialized as torch.ones(num_heads); perturb slightly so the
    # per-head scaling path is actually exercised by the check.
    q_scale = jnp.ones((H,), dtype=jnp.float32) + 0.1 * jax.random.normal(
        ks, (H,), dtype=jnp.float32)

    # One-time parameter packing (lane group G = 128 // C = 4 here).
    G = no_att_lane_group(C)
    w_packed, scale_packed = no_att_pack_params(
        w_stacked, q_scale, group=G, dtype=x.dtype)

    out = no_att_forward(x, w_packed, scale_packed, group=G)
    out = jax.block_until_ready(out)

    ref = no_att_reference(x, w_stacked, q_scale)
    assert out.shape == (B, 1, C)
    assert jnp.allclose(out, ref, rtol=1e-5, atol=1e-5)

    print("KERNEL_OK")
</pallas_src>

<mosaic_0001>
module attributes {stable_mosaic.version = 11 : i64} {
  func.func @no_att_kernel(%arg0: i32, %arg1: memref<1x128xf32, #tpu.memory_space<vmem>>, %arg2: memref<128x128xf32, #tpu.memory_space<vmem>>, %arg3: memref<1x128xf32, #tpu.memory_space<vmem>>, %arg4: memref<1x128xf32, #tpu.memory_space<vmem>>) attributes {dimension_semantics = [#tpu.dimension_semantics<parallel>], iteration_bounds = array<i64: 1>, scalar_prefetch = 0 : i64, scratch_operands = 0 : i64, tpu.core_type = #tpu.core_type<tc>, window_params = [{transform_indices = @transform_0, window_bounds = array<i64: 1, 128>}, {pipeline_mode = #tpu.pipeline_mode<synchronous>, transform_indices = @transform_1, window_bounds = array<i64: 128, 128>}, {pipeline_mode = #tpu.pipeline_mode<synchronous>, transform_indices = @transform_2, window_bounds = array<i64: 1, 128>}, {transform_indices = @transform_3, window_bounds = array<i64: 1, 128>}]} {
    %c0 = arith.constant 0 : index
    %c0_0 = arith.constant 0 : index
    %0 = vector.load %arg1[%c0, %c0_0] : memref<1x128xf32, #tpu.memory_space<vmem>>, vector<1x128xf32>
    %c0_1 = arith.constant 0 : index
    %c0_2 = arith.constant 0 : index
    %1 = vector.load %arg2[%c0_1, %c0_2] : memref<128x128xf32, #tpu.memory_space<vmem>>, vector<128x128xf32>
    %cst = arith.constant dense<0.000000e+00> : vector<1x128xf32>
    %2 = tpu.matmul %0, %1, %cst {dimension_numbers = #tpu.dot_dimension_numbers<[1], [0], [0], [1], [0, 0, 1, 1], [], []>} : vector<1x128xf32>, vector<128x128xf32>, vector<1x128xf32> -> vector<1x128xf32>
    %c0_3 = arith.constant 0 : index
    %c0_4 = arith.constant 0 : index
    %3 = vector.load %arg3[%c0_3, %c0_4] : memref<1x128xf32, #tpu.memory_space<vmem>>, vector<1x128xf32>
    %4 = arith.mulf %2, %3 : vector<1x128xf32>
    %c0_5 = arith.constant 0 : index
    %c0_6 = arith.constant 0 : index
    %5 = vector.load %arg4[%c0_5, %c0_6] : memref<1x128xf32, #tpu.memory_space<vmem>>, vector<1x128xf32>
    tpu.vector_store %arg4[%c0_5, %c0_6], %4 {strides = array<i32>} : memref<1x128xf32, #tpu.memory_space<vmem>>, vector<1x128xf32>,
    return
  }
  func.func @transform_0(%arg0: i32) -> (i32, i32) {
    %c0_i32 = arith.constant 0 : i32
    %c0_i32_0 = arith.constant 0 : i32
    return %arg0, %c0_i32 : i32, i32
  }
  func.func @transform_1(%arg0: i32) -> (i32, i32) {
    %c0_i32 = arith.constant 0 : i32
    %c0_i32_0 = arith.constant 0 : i32
    %c0_i32_1 = arith.constant 0 : i32
    return %c0_i32, %c0_i32_0 : i32, i32
  }
  func.func @transform_2(%arg0: i32) -> (i32, i32) {
    %c0_i32 = arith.constant 0 : i32
    %c0_i32_0 = arith.constant 0 : i32
    %c0_i32_1 = arith.constant 0 : i32
    return %c0_i32, %c0_i32_0 : i32, i32
  }
  func.func @transform_3(%arg0: i32) -> (i32, i32) {
    %c0_i32 = arith.constant 0 : i32
    %c0_i32_0 = arith.constant 0 : i32
    return %arg0, %c0_i32 : i32, i32
  }
}

module attributes {stable_mosaic.version = 11 : i64} {
  func.func @no_att_kernel(%arg0: i32, %arg1: memref<1x128xf32, #tpu.memory_space<vmem>>, %arg2: memref<128x128xf32, #tpu.memory_space<vmem>>, %arg3: memref<1x128xf32, #tpu.memory_space<vmem>>, %arg4: memref<1x128xf32, #tpu.memory_space<vmem>>) attributes {dimension_semantics = [#tpu.dimension_semantics<parallel>], iteration_bounds = array<i64: 1>, scalar_prefetch = 0 : i64, scratch_operands = 0 : i64, tpu.core_type = #tpu.core_type<tc>, window_params = [{transform_indices = @transform_0, window_bounds = array<i64: 1, 128>}, {pipeline_mode = #tpu.pipeline_mode<synchronous>, transform_indices = @transform_1, window_bounds = array<i64: 128, 128>}, {pipeline_mode = #tpu.pipeline_mode<synchronous>, transform_indices = @transform_2, window_bounds = array<i64: 1, 128>}, {transform_indices = @transform_3, window_bounds = array<i64: 1, 128>}]} {
    %c0 = arith.constant 0 : index
    %c0_0 = arith.constant 0 : index
    %0 = vector.load %arg1[%c0, %c0_0] : memref<1x128xf32, #tpu.memory_space<vmem>>, vector<1x128xf32>
    %c0_1 = arith.constant 0 : index
    %c0_2 = arith.constant 0 : index
    %1 = vector.load %arg2[%c0_1, %c0_2] : memref<128x128xf32, #tpu.memory_space<vmem>>, vector<128x128xf32>
    %cst = arith.constant dense<0.000000e+00> : vector<1x128xf32>
    %2 = tpu.matmul %0, %1, %cst {dimension_numbers = #tpu.dot_dimension_numbers<[1], [0], [0], [1], [0, 0, 1, 1], [], []>} : vector<1x128xf32>, vector<128x128xf32>, vector<1x128xf32> -> vector<1x128xf32>
    %c0_3 = arith.constant 0 : index
    %c0_4 = arith.constant 0 : index
    %3 = vector.load %arg3[%c0_3, %c0_4] : memref<1x128xf32, #tpu.memory_space<vmem>>, vector<1x128xf32>
    %4 = arith.mulf %2, %3 : vector<1x128xf32>
    %c0_5 = arith.constant 0 : index
    %c0_6 = arith.constant 0 : index
    %5 = vector.load %arg4[%c0_5, %c0_6] : memref<1x128xf32, #tpu.memory_space<vmem>>, vector<1x128xf32>
    tpu.vector_store %arg4[%c0_5, %c0_6], %4 {strides = array<i32>} : memref<1x128xf32, #tpu.memory_space<vmem>>, vector<1x128xf32>,
    return
  }
  func.func @transform_0(%arg0: i32) -> (i32, i32) {
    %c0_i32 = arith.constant 0 : i32
    %c0_i32_0 = arith.constant 0 : i32
    return %arg0, %c0_i32 : i32, i32
  }
  func.func @transform_1(%arg0: i32) -> (i32, i32) {
    %c0_i32 = arith.constant 0 : i32
    %c0_i32_0 = arith.constant 0 : i32
    %c0_i32_1 = arith.constant 0 : i32
    return %c0_i32, %c0_i32_0 : i32, i32
  }
  func.func @transform_2(%arg0: i32) -> (i32, i32) {
    %c0_i32 = arith.constant 0 : i32
    %c0_i32_0 = arith.constant 0 : i32
    %c0_i32_1 = arith.constant 0 : i32
    return %c0_i32, %c0_i32_0 : i32, i32
  }
  func.func @transform_3(%arg0: i32) -> (i32, i32) {
    %c0_i32 = arith.constant 0 : i32
    %c0_i32_0 = arith.constant 0 : i32
    return %arg0, %c0_i32 : i32, i32
  }
}

</mosaic_0001>

<llo_original>
// kernel: tpu_custom_call.1
$region0: #{tpu_custom_call.1}
  #allocation0 [shape = 'u32[]', space=smem, size = 0x4, offset = 0x4, fixed_abs, tag = 'smem constant byte address 0x4 - core index']
  #allocation1 [shape = 'u32[72,128]{1,0:T(1,128)}', space=vmem, size = 0x9000, scoped, tag = 'internal scratch']
  %s0 = inlined_call_operand.hbm [shape: f32[1,128], index: 0, kind: input, shape index: {}]
  %s1 = inlined_call_operand.hbm [shape: f32[128,128], index: 1, kind: input, shape index: {}]
  %s2 = inlined_call_operand.vmem [shape: f32[1,128], index: 2, kind: input, shape index: {}]
  %s3 = inlined_call_operand.hbm [shape: f32[1,128], index: 3, kind: output, shape index: {}]
  %s4 = sld [smem:[#allocation0]]
  $region30: #{tpu_custom_call.1} parent=0
    _
  %s6 = ssub.s32 1, %s4
  %s7 = scalar_select 0, %s6, %s4
  $region1: #{tpu_custom_call.1} parent=0
    #allocation2 [shape = 'u8[512]{0}', space=vmem, size = 0x400, scoped, tag = 'input window, operand 0, single buffered']
    #allocation3 [shape = 's32[1]{0}', space=sflag, size = 0x4, scoped, tag = 'scoped memory for tpu_custom_call.1']
    #allocation4 [shape = 's32[1]{0}', space=sflag, size = 0x4, scoped, tag = 'scoped memory for tpu_custom_call.1']
    #allocation5 [shape = 'u8[65536]{0}', space=vmem, size = 0x10000, scoped, tag = 'input window, operand 1, single buffered']
    #allocation6 [shape = 's32[1]{0}', space=sflag, size = 0x4, scoped, tag = 'scoped memory for tpu_custom_call.1']
    #allocation7 [shape = 'u8[512]{0}', space=vmem, size = 0x400, scoped, tag = 'output window, operand 0, single buffered']
    %8 = vsyncpa [#allocation3], 0
    %9 = vsyncpa [#allocation6], 0
    %10 = vsyncpa [#allocation4], 0
    // Predicated region
    $region2: #{tpu_custom_call.1} parent=1 // pred_check
      _
    $region3: #{tpu_custom_call.1} parent=1 // pred_check_branch
      %12 = sbr.rel (0) target = $region5
    $region4: #{tpu_custom_call.1} parent=1 // pred_region
      %14 = vsyncadd [#allocation3], 0
      %s16 = sshll.u32 %s0, 4
      %s17 = int_to_ptr.hbm [resolvable:$true] %s16
      %s18 = sshll.u32 [#allocation2], 4
      %s19 = int_to_ptr.vmem [resolvable:$true] %s18
      %21 = dma.hbm_to_vmem [thread:$0]  %s17, 16, %s19, [#allocation3]
    $region5: #{tpu_custom_call.1} parent=1 // pred_fallthru
      _
    // Predicated region
    $region6: #{tpu_custom_call.1} parent=1 // pred_check
      _
    $region7: #{tpu_custom_call.1} parent=1 // pred_check_branch
      %23 = sbr.rel (0) target = $region9
    $region8: #{tpu_custom_call.1} parent=1 // pred_region
      %25 = vsyncadd [#allocation6], 0
      %s26 = sshll.u32 %s1, 4
      %s27 = int_to_ptr.hbm [resolvable:$true] %s26
      %s28 = sshll.u32 [#allocation5], 4
      %s29 = int_to_ptr.vmem [resolvable:$true] %s28
      %34 = dma.hbm_to_vmem [thread:$0]  %s27, 2048, %s29, [#allocation6], 128, 128, 8
    $region9: #{tpu_custom_call.1} parent=1 // pred_fallthru
      _
    // Predicated region
    $region10: #{tpu_custom_call.1} parent=1 // pred_check
      _
    $region11: #{tpu_custom_call.1} parent=1 // pred_check_branch
      %36 = sbr.rel (0) target = $region13
    $region12: #{tpu_custom_call.1} parent=1 // pred_region
      _
    $region13: #{tpu_custom_call.1} parent=1 // pred_fallthru
      _
    // Predicated region
    $region14: #{tpu_custom_call.1} parent=1 // pred_check
      _
    $region15: #{tpu_custom_call.1} parent=1 // pred_check_branch
      %38 = sbr.rel (0) target = $region17
    $region16: #{tpu_custom_call.1} parent=1 // pred_region
      %40 = dma.done [#allocation3], 16
    $region17: #{tpu_custom_call.1} parent=1 // pred_fallthru
      _
    // Predicated region
    $region18: #{tpu_custom_call.1} parent=1 // pred_check
      _
    $region19: #{tpu_custom_call.1} parent=1 // pred_check_branch
      %42 = sbr.rel (0) target = $region21
    $region20: #{tpu_custom_call.1} parent=1 // pred_region
      %44 = dma.done [#allocation6], 2048
    $region21: #{tpu_custom_call.1} parent=1 // pred_fallthru
      _
    %v45 = vld [vmem:[#allocation2] sm:$0x1]
    %v46 = vld [vmem:[#allocation5] sm:$0xff]
    %v47 = vld [vmem:[#allocation5 + $0x8] sm:$0xff]
    %v48 = vld [vmem:[#allocation5 + $0x10] sm:$0xff]
    %v49 = vld [vmem:[#allocation5 + $0x18] sm:$0xff]
    %v50 = vld [vmem:[#allocation5 + $0x20] sm:$0xff]
    %v51 = vld [vmem:[#allocation5 + $0x28] sm:$0xff]
    %v52 = vld [vmem:[#allocation5 + $0x30] sm:$0xff]
    %v53 = vld [vmem:[#allocation5 + $0x38] sm:$0xff]
    %v54 = vld [vmem:[#allocation5 + $0x40] sm:$0xff]
    %v55 = vld [vmem:[#allocation5 + $0x48] sm:$0xff]
    %v56 = vld [vmem:[#allocation5 + $0x50] sm:$0xff]
    %v57 = vld [vmem:[#allocation5 + $0x58] sm:$0xff]
    %v58 = vld [vmem:[#allocation5 + $0x60] sm:$0xff]
    %v59 = vld [vmem:[#allocation5 + $0x68] sm:$0xff]
    %v60 = vld [vmem:[#allocation5 + $0x70] sm:$0xff]
    %v61 = vld [vmem:[#allocation5 + $0x78] sm:$0xff]
    %62 = vmatpush.msra.mxu0 %v61
    %63 = vmatpush.msra.mxu0 %v60
    %64 = vmatpush.msra.mxu0 %v59
    %65 = vmatpush.msra.mxu0 %v58
    %66 = vmatpush.msra.mxu0 %v57
    %67 = vmatpush.msra.mxu0 %v56
    %68 = vmatpush.msra.mxu0 %v55
    %69 = vmatpush.msra.mxu0 %v54
    %70 = vmatpush.msra.mxu0 %v53
    %71 = vmatpush.msra.mxu0 %v52
    %72 = vmatpush.msra.mxu0 %v51
    %73 = vmatpush.msra.mxu0 %v50
    %74 = vmatpush.msra.mxu0 %v49
    %75 = vmatpush.msra.mxu0 %v48
    %76 = vmatpush.msra.mxu0 %v47
    %77 = vmatpush.msra.mxu0 %v46
    %78 = vmatmul.f32.gmra.mxu0 %v45
    %v79 = vpop.f32.mrf.mxu0
    %v80 = vadd.f32 0.0, %v79
    %81 = vdwg.mxu0
    %v82 = vld [vmem:[%s2] sm:$0x1]
    %v83 = vmul.f32 %v80, %v82
    %84 = vst [vmem:[#allocation7] sm:$0x1] %v83
    // Predicated region
    $region22: #{tpu_custom_call.1} parent=1 // pred_check
      _
    $region23: #{tpu_custom_call.1} parent=1 // pred_check_branch
      %86 = sbr.rel (0) target = $region25
    $region24: #{tpu_custom_call.1} parent=1 // pred_region
      %88 = vsyncadd [#allocation4], 0
      %s90 = sshll.u32 [#allocation7], 4
      %s91 = int_to_ptr.vmem [resolvable:$true] %s90
      %s92 = sshll.u32 %s3, 4
      %s93 = int_to_ptr.hbm [resolvable:$true] %s92
      %95 = dma.vmem_to_hbm [thread:$0]  %s91, 16, %s93, [#allocation4]
    $region25: #{tpu_custom_call.1} parent=1 // pred_fallthru
      _
    // Predicated region
    $region26: #{tpu_custom_call.1} parent=1 // pred_check
      _
    $region27: #{tpu_custom_call.1} parent=1 // pred_check_branch
      %97 = sbr.rel (0) target = $region29
    $region28: #{tpu_custom_call.1} parent=1 // pred_region
      %99 = dma.done [#allocation4], 16
    $region29: #{tpu_custom_call.1} parent=1 // pred_fallthru
      _
    %100 = vsyncpa [#allocation3], 1
    %101 = vsyncpa [#allocation6], 1
    %102 = vsyncpa [#allocation4], 1

// kernel: tpu_custom_call.1
$region0: #{tpu_custom_call.1}
  #allocation0 [shape = 'u32[]', space=smem, size = 0x4, offset = 0x4, fixed_abs, tag = 'smem constant byte address 0x4 - core index']
  #allocation1 [shape = 'u32[72,128]{1,0:T(1,128)}', space=vmem, size = 0x9000, scoped, tag = 'internal scratch']
  %s0 = inlined_call_operand.hbm [shape: f32[1,128], index: 0, kind: input, shape index: {}]
  %s1 = inlined_call_operand.hbm [shape: f32[128,128], index: 1, kind: input, shape index: {}]
  %s2 = inlined_call_operand.vmem [shape: f32[1,128], index: 2, kind: input, shape index: {}]
  %s3 = inlined_call_operand.hbm [shape: f32[1,128], index: 3, kind: output, shape index: {}]
  %s4 = sld [smem:[#allocation0]]
  $region30: #{tpu_custom_call.1} parent=0
    _
  %s6 = ssub.s32 1, %s4
  %s7 = scalar_select 0, %s6, %s4
  $region1: #{tpu_custom_call.1} parent=0
    #allocation2 [shape = 'u8[512]{0}', space=vmem, size = 0x400, scoped, tag = 'input window, operand 0, single buffered']
    #allocation3 [shape = 's32[1]{0}', space=sflag, size = 0x4, scoped, tag = 'scoped memory for tpu_custom_call.1']
    #allocation4 [shape = 's32[1]{0}', space=sflag, size = 0x4, scoped, tag = 'scoped memory for tpu_custom_call.1']
    #allocation5 [shape = 'u8[65536]{0}', space=vmem, size = 0x10000, scoped, tag = 'input window, operand 1, single buffered']
    #allocation6 [shape = 's32[1]{0}', space=sflag, size = 0x4, scoped, tag = 'scoped memory for tpu_custom_call.1']
    #allocation7 [shape = 'u8[512]{0}', space=vmem, size = 0x400, scoped, tag = 'output window, operand 0, single buffered']
    %8 = vsyncpa [#allocation3], 0
    %9 = vsyncpa [#allocation6], 0
    %10 = vsyncpa [#allocation4], 0
    // Predicated region
    $region2: #{tpu_custom_call.1} parent=1 // pred_check
      _
    $region3: #{tpu_custom_call.1} parent=1 // pred_check_branch
      %12 = sbr.rel (0) target = $region5
    $region4: #{tpu_custom_call.1} parent=1 // pred_region
      %14 = vsyncadd [#allocation3], 0
      %s16 = sshll.u32 %s0, 4
      %s17 = int_to_ptr.hbm [resolvable:$true] %s16
      %s18 = sshll.u32 [#allocation2], 4
      %s19 = int_to_ptr.vmem [resolvable:$true] %s18
      %21 = dma.hbm_to_vmem [thread:$0]  %s17, 16, %s19, [#allocation3]
    $region5: #{tpu_custom_call.1} parent=1 // pred_fallthru
      _
    // Predicated region
    $region6: #{tpu_custom_call.1} parent=1 // pred_check
      _
    $region7: #{tpu_custom_call.1} parent=1 // pred_check_branch
      %23 = sbr.rel (0) target = $region9
    $region8: #{tpu_custom_call.1} parent=1 // pred_region
      %25 = vsyncadd [#allocation6], 0
      %s26 = sshll.u32 %s1, 4
      %s27 = int_to_ptr.hbm [resolvable:$true] %s26
      %s28 = sshll.u32 [#allocation5], 4
      %s29 = int_to_ptr.vmem [resolvable:$true] %s28
      %34 = dma.hbm_to_vmem [thread:$0]  %s27, 2048, %s29, [#allocation6], 128, 128, 8
    $region9: #{tpu_custom_call.1} parent=1 // pred_fallthru
      _
    // Predicated region
    $region10: #{tpu_custom_call.1} parent=1 // pred_check
      _
    $region11: #{tpu_custom_call.1} parent=1 // pred_check_branch
      %36 = sbr.rel (0) target = $region13
    $region12: #{tpu_custom_call.1} parent=1 // pred_region
      _
    $region13: #{tpu_custom_call.1} parent=1 // pred_fallthru
      _
    // Predicated region
    $region14: #{tpu_custom_call.1} parent=1 // pred_check
      _
    $region15: #{tpu_custom_call.1} parent=1 // pred_check_branch
      %38 = sbr.rel (0) target = $region17
    $region16: #{tpu_custom_call.1} parent=1 // pred_region
      %40 = dma.done [#allocation3], 16
    $region17: #{tpu_custom_call.1} parent=1 // pred_fallthru
      _
    // Predicated region
    $region18: #{tpu_custom_call.1} parent=1 // pred_check
      _
    $region19: #{tpu_custom_call.1} parent=1 // pred_check_branch
      %42 = sbr.rel (0) target = $region21
    $region20: #{tpu_custom_call.1} parent=1 // pred_region
      %44 = dma.done [#allocation6], 2048
    $region21: #{tpu_custom_call.1} parent=1 // pred_fallthru
      _
    %v45 = vld [vmem:[#allocation2] sm:$0x1]
    %v46 = vld [vmem:[#allocation5] sm:$0xff]
    %v47 = vld [vmem:[#allocation5 + $0x8] sm:$0xff]
    %v48 = vld [vmem:[#allocation5 + $0x10] sm:$0xff]
    %v49 = vld [vmem:[#allocation5 + $0x18] sm:$0xff]
    %v50 = vld [vmem:[#allocation5 + $0x20] sm:$0xff]
    %v51 = vld [vmem:[#allocation5 + $0x28] sm:$0xff]
    %v52 = vld [vmem:[#allocation5 + $0x30] sm:$0xff]
    %v53 = vld [vmem:[#allocation5 + $0x38] sm:$0xff]
    %v54 = vld [vmem:[#allocation5 + $0x40] sm:$0xff]
    %v55 = vld [vmem:[#allocation5 + $0x48] sm:$0xff]
    %v56 = vld [vmem:[#allocation5 + $0x50] sm:$0xff]
    %v57 = vld [vmem:[#allocation5 + $0x58] sm:$0xff]
    %v58 = vld [vmem:[#allocation5 + $0x60] sm:$0xff]
    %v59 = vld [vmem:[#allocation5 + $0x68] sm:$0xff]
    %v60 = vld [vmem:[#allocation5 + $0x70] sm:$0xff]
    %v61 = vld [vmem:[#allocation5 + $0x78] sm:$0xff]
    %62 = vmatpush.msra.mxu0 %v61
    %63 = vmatpush.msra.mxu0 %v60
    %64 = vmatpush.msra.mxu0 %v59
    %65 = vmatpush.msra.mxu0 %v58
    %66 = vmatpush.msra.mxu0 %v57
    %67 = vmatpush.msra.mxu0 %v56
    %68 = vmatpush.msra.mxu0 %v55
    %69 = vmatpush.msra.mxu0 %v54
    %70 = vmatpush.msra.mxu0 %v53
    %71 = vmatpush.msra.mxu0 %v52
    %72 = vmatpush.msra.mxu0 %v51
    %73 = vmatpush.msra.mxu0 %v50
    %74 = vmatpush.msra.mxu0 %v49
    %75 = vmatpush.msra.mxu0 %v48
    %76 = vmatpush.msra.mxu0 %v47
    %77 = vmatpush.msra.mxu0 %v46
    %78 = vmatmul.f32.gmra.mxu0 %v45
    %v79 = vpop.f32.mrf.mxu0
    %v80 = vadd.f32 0.0, %v79
    %81 = vdwg.mxu0
    %v82 = vld [vmem:[%s2] sm:$0x1]
    %v83 = vmul.f32 %v80, %v82
    %84 = vst [vmem:[#allocation7] sm:$0x1] %v83
    // Predicated region
    $region22: #{tpu_custom_call.1} parent=1 // pred_check
      _
    $region23: #{tpu_custom_call.1} parent=1 // pred_check_branch
      %86 = sbr.rel (0) target = $region25
    $region24: #{tpu_custom_call.1} parent=1 // pred_region
      %88 = vsyncadd [#allocation4], 0
      %s90 = sshll.u32 [#allocation7], 4
      %s91 = int_to_ptr.vmem [resolvable:$true] %s90
      %s92 = sshll.u32 %s3, 4
      %s93 = int_to_ptr.hbm [resolvable:$true] %s92
      %95 = dma.vmem_to_hbm [thread:$0]  %s91, 16, %s93, [#allocation4]
    $region25: #{tpu_custom_call.1} parent=1 // pred_fallthru
      _
    // Predicated region
    $region26: #{tpu_custom_call.1} parent=1 // pred_check
      _
    $region27: #{tpu_custom_call.1} parent=1 // pred_check_branch
      %97 = sbr.rel (0) target = $region29
    $region28: #{tpu_custom_call.1} parent=1 // pred_region
      %99 = dma.done [#allocation4], 16
    $region29: #{tpu_custom_call.1} parent=1 // pred_fallthru
      _
    %100 = vsyncpa [#allocation3], 1
    %101 = vsyncpa [#allocation6], 1
    %102 = vsyncpa [#allocation4], 1

</llo_original>
